<compile_context>
chip_gen: v5e
topology: v5e:2x2
jax: 0.10.0
libtpu: 0.0.40
codegen_flags: <defaults>
</compile_context>

<pallas_src>
import functools

import jax
import jax.numpy as jnp
from jax import lax
from jax.experimental import pallas as pl
from jax.experimental.pallas import tpu as pltpu


# Row indices inside the packed "vecs" operand.
_BQKV, _BO, _LN1G, _LN1B, _LN2G, _LN2B, _B1, _B2, _BC = range(9)
_NUM_VECS = 9


def _layer_norm(v, g, b, eps=1e-5):
    mu = jnp.mean(v, axis=-1, keepdims=True)
    var = jnp.mean(jnp.square(v - mu), axis=-1, keepdims=True)
    return (v - mu) * jax.lax.rsqrt(var + eps) * g + b


def discriminator_kernel(x_ref, wqkv_ref, wo_ref, w1_ref, w2_ref, wc_ref, vecs_ref,
                         out_ref, q_scr, k_scr, v_scr, ctx_scr, h_scr, *, row_tile):
    xb = x_ref[0]                                  # (S, H) bf16
    S, H = xb.shape
    x32 = xb.astype(jnp.float32)                   # f32 for residuals / LN
    nh, _, hd = q_scr.shape
    F = w1_ref.shape[1]
    Cp = wc_ref.shape[1]

    vecs = vecs_ref[...]                           # (9, W) f32, packed small vectors

    # ---- fused QKV projection: one fat 2-D bf16 MXU matmul, f32 accumulation ----
    # (1/sqrt(hd) scale already folded into the Q columns of wqkv / bqkv.)
    qkv = jnp.dot(xb, wqkv_ref[...], preferred_element_type=jnp.float32)
    qkv = qkv + vecs[_BQKV:_BQKV + 1, :3 * H]      # (S, 3H) f32

    # ---- stage per-head tensors into bf16 VMEM scratch at static offsets --------
    for h in range(nh):                            # static, fully unrolled
        q_scr[h] = qkv[:, h * hd:(h + 1) * hd].astype(jnp.bfloat16)
        k_scr[h] = qkv[:, H + h * hd:H + (h + 1) * hd].astype(jnp.bfloat16)
        v_scr[h] = qkv[:, 2 * H + h * hd:2 * H + (h + 1) * hd].astype(jnp.bfloat16)

    # ---- head-batched attention (batched MXU matmuls, batch dim leading) --------
    scores = jnp.einsum('hsd,htd->hst', q_scr[...], k_scr[...],
                        preferred_element_type=jnp.float32)      # (nh, S, S) f32
    scores = scores - jnp.max(scores, axis=-1, keepdims=True)
    p = jnp.exp(scores)
    denom = jnp.sum(p, axis=-1, keepdims=True)
    p = p * pl.reciprocal(denom, approx=True)                    # EUP, not VALU divide

    ctx = jnp.einsum('hst,htd->hsd', p.astype(jnp.bfloat16), v_scr[...],
                     preferred_element_type=jnp.float32)         # (nh, S, hd) f32

    # ---- output projection: stage ctx head-concat into (S, H) bf16, one matmul ----
    for h in range(nh):                            # static lane offsets
        ctx_scr[:, h * hd:(h + 1) * hd] = ctx[h].astype(jnp.bfloat16)
    attn = jnp.dot(ctx_scr[...], wo_ref[...],
                   preferred_element_type=jnp.float32) + vecs[_BO:_BO + 1, :H]

    # ---- residual kept in VMEM scratch; FFN path is row-tiled over S --------------
    h_scr[...] = x32 + attn                        # pre-LN1 residual, (S, H) f32

    ln1g = vecs[_LN1G:_LN1G + 1, :H]
    ln1b = vecs[_LN1B:_LN1B + 1, :H]
    ln2g = vecs[_LN2G:_LN2G + 1, :H]
    ln2b = vecs[_LN2B:_LN2B + 1, :H]
    b1 = vecs[_B1:_B1 + 1, :F]
    b2 = vecs[_B2:_B2 + 1, :H]
    bc = vecs[_BC:_BC + 1, :Cp]

    TS = row_tile
    n_tiles = S // TS

    def ffn_tile(i, carry):
        r0 = pl.multiple_of(i * TS, TS)
        y = h_scr[pl.ds(r0, TS), :]                               # (TS, H) f32
        h1 = _layer_norm(y, ln1g, ln1b)
        ff = jnp.dot(h1.astype(jnp.bfloat16), w1_ref[...],
                     preferred_element_type=jnp.float32) + b1     # (TS, F)
        ff = jax.nn.gelu(ff, approximate=True)
        ff = jnp.dot(ff.astype(jnp.bfloat16), w2_ref[...],
                     preferred_element_type=jnp.float32) + b2     # (TS, H)
        h2 = _layer_norm(h1 + ff, ln2g, ln2b)
        logits = jnp.dot(h2.astype(jnp.bfloat16), wc_ref[...],
                         preferred_element_type=jnp.float32) + bc  # (TS, Cp)
        out_ref[0, pl.ds(r0, TS), :] = logits.astype(out_ref.dtype)
        return carry

    lax.fori_loop(0, n_tiles, ffn_tile, 0)


def _const_spec(shape):
    """Full-array block, constant across the grid, single-buffered (fetched once)."""
    nd = len(shape)
    return pl.BlockSpec(shape, lambda b, _nd=nd: (0,) * _nd,
                        pipeline_mode=pl.Buffered(1))


def _pick_row_tile(S, target=256):
    """Largest divisor of S that is <= target and a multiple of 8 (else S itself)."""
    for ts in range(min(S, target), 0, -1):
        if S % ts == 0 and (ts % 8 == 0 or ts == S):
            return ts
    return S


def _vmem_limit_bytes():
    try:
        cap = getattr(pltpu.get_tpu_info(), "vmem_capacity_bytes", 128 * 1024 * 1024)
    except Exception:
        cap = 128 * 1024 * 1024
    # ~38 MiB on v7x (64 MiB physical), 48 MiB on v5e/v6e (128 MiB physical).
    return min(48 * 1024 * 1024, int(cap * 0.6))


def discriminator_forward(x, params, *, num_heads, pad_classes_to=128):
    B, S, H = x.shape
    assert H % num_heads == 0, (H, num_heads)
    hd = H // num_heads
    F = params["w1"].shape[1]
    C = params["wc"].shape[1]
    Cp = max(pad_classes_to, ((C + 127) // 128) * 128)
    scale = 1.0 / (float(hd) ** 0.5)

    bf16 = jnp.bfloat16
    # Wrapper-side layout plumbing: bf16 weights, query-scale folded into wqkv/bqkv,
    # lane-dense padded classifier, and all small vectors packed into one operand.
    wqkv = params["wqkv"].at[:, :H].multiply(scale).astype(bf16)          # (H, 3H)
    wo = params["wo"].astype(bf16)                                        # (H, H)
    w1 = params["w1"].astype(bf16)                                        # (H, F)
    w2 = params["w2"].astype(bf16)                                        # (F, H)
    wc = jnp.zeros((H, Cp), jnp.float32).at[:, :C].set(params["wc"]).astype(bf16)

    W = ((max(3 * H, F, Cp) + 127) // 128) * 128
    vecs = jnp.zeros((_NUM_VECS, W), jnp.float32)
    vecs = vecs.at[_BQKV, :3 * H].set(params["bqkv"].at[:H].multiply(scale))
    vecs = vecs.at[_BO, :H].set(params["bo"])
    vecs = vecs.at[_LN1G, :H].set(params["ln1g"])
    vecs = vecs.at[_LN1B, :H].set(params["ln1b"])
    vecs = vecs.at[_LN2G, :H].set(params["ln2g"])
    vecs = vecs.at[_LN2B, :H].set(params["ln2b"])
    vecs = vecs.at[_B1, :F].set(params["b1"])
    vecs = vecs.at[_B2, :H].set(params["b2"])
    vecs = vecs.at[_BC, :C].set(params["bc"])

    x_bf = x.astype(bf16)           # halves per-step input DMA bytes
    TS = _pick_row_tile(S)

    kernel = functools.partial(discriminator_kernel, row_tile=TS)

    out_padded = pl.pallas_call(
        kernel,
        out_shape=jax.ShapeDtypeStruct((B, S, Cp), jnp.float32),
        grid_spec=pltpu.PrefetchScalarGridSpec(
            num_scalar_prefetch=0,
            grid=(B,),
            in_specs=[
                pl.BlockSpec((1, S, H), lambda b: (b, 0, 0)),
                _const_spec(wqkv.shape),
                _const_spec(wo.shape),
                _const_spec(w1.shape),
                _const_spec(w2.shape),
                _const_spec(wc.shape),
                _const_spec(vecs.shape),
            ],
            out_specs=pl.BlockSpec((1, S, Cp), lambda b: (b, 0, 0)),
            scratch_shapes=[
                pltpu.VMEM((num_heads, S, hd), jnp.bfloat16),   # q (pre-scaled)
                pltpu.VMEM((num_heads, S, hd), jnp.bfloat16),   # k
                pltpu.VMEM((num_heads, S, hd), jnp.bfloat16),   # v
                pltpu.VMEM((S, H), jnp.bfloat16),               # ctx (head concat)
                pltpu.VMEM((S, H), jnp.float32),                # x + attn residual
            ],
        ),
        compiler_params=pltpu.CompilerParams(
            dimension_semantics=("parallel",),
            vmem_limit_bytes=_vmem_limit_bytes(),
        ),
    )(x_bf, wqkv, wo, w1, w2, wc, vecs)

    return out_padded[:, :, :C]     # strip the lane padding outside the kernel


def init_params(key, hidden_size, ffn_size, num_classes):
    ks = jax.random.split(key, 5)
    std = 0.02
    f32 = jnp.float32
    H, F, C = hidden_size, ffn_size, num_classes
    return {
        "wqkv": jax.random.normal(ks[0], (H, 3 * H), f32) * std,
        "bqkv": jnp.zeros((3 * H,), f32),
        "wo":   jax.random.normal(ks[1], (H, H), f32) * std,
        "bo":   jnp.zeros((H,), f32),
        "ln1g": jnp.ones((H,), f32),
        "ln1b": jnp.zeros((H,), f32),
        "ln2g": jnp.ones((H,), f32),
        "ln2b": jnp.zeros((H,), f32),
        "w1":   jax.random.normal(ks[2], (H, F), f32) * std,
        "b1":   jnp.zeros((F,), f32),
        "w2":   jax.random.normal(ks[3], (F, H), f32) * std,
        "b2":   jnp.zeros((H,), f32),
        "wc":   jax.random.normal(ks[4], (H, C), f32) * std,
        "bc":   jnp.zeros((C,), f32),
    }


if __name__ == "__main__":
    # Small shapes consistent with the module (hidden_size scaled down from 768).
    B, S, H = 2, 8, 32
    NUM_HEADS = 4
    FFN = 4 * H
    NUM_CLASSES = 2

    key = jax.random.PRNGKey(0)
    kx, kp = jax.random.split(key)
    x = jax.random.normal(kx, (B, S, H), jnp.float32)
    params = init_params(kp, H, FFN, NUM_CLASSES)

    logits = discriminator_forward(x, params, num_heads=NUM_HEADS)
    logits = jax.block_until_ready(logits)

    assert logits.shape == (B, S, NUM_CLASSES), logits.shape
    assert bool(jnp.all(jnp.isfinite(logits)))
    print("KERNEL_OK")
</pallas_src>

<mosaic_0001>
module attributes {stable_mosaic.version = 11 : i64} {
  func.func @discriminator_kernel(%arg0: i32, %arg1: memref<1x8x32xbf16, #tpu.memory_space<vmem>>, %arg2: memref<32x96xbf16, #tpu.memory_space<vmem>>, %arg3: memref<32x32xbf16, #tpu.memory_space<vmem>>, %arg4: memref<32x128xbf16, #tpu.memory_space<vmem>>, %arg5: memref<128x32xbf16, #tpu.memory_space<vmem>>, %arg6: memref<32x128xbf16, #tpu.memory_space<vmem>>, %arg7: memref<9x128xf32, #tpu.memory_space<vmem>>, %arg8: memref<1x8x128xf32, #tpu.memory_space<vmem>>, %arg9: memref<4x8x8xbf16, #tpu.memory_space<vmem>>, %arg10: memref<4x8x8xbf16, #tpu.memory_space<vmem>>, %arg11: memref<4x8x8xbf16, #tpu.memory_space<vmem>>, %arg12: memref<8x32xbf16, #tpu.memory_space<vmem>>, %arg13: memref<8x32xf32, #tpu.memory_space<vmem>>) attributes {dimension_semantics = [#tpu.dimension_semantics<parallel>], iteration_bounds = array<i64: 2>, scalar_prefetch = 0 : i64, scratch_operands = 5 : i64, tpu.core_type = #tpu.core_type<tc>, window_params = [{transform_indices = @transform_0, window_bounds = array<i64: 1, 8, 32>}, {pipeline_mode = #tpu.pipeline_mode<synchronous>, transform_indices = @transform_1, window_bounds = array<i64: 32, 96>}, {pipeline_mode = #tpu.pipeline_mode<synchronous>, transform_indices = @transform_2, window_bounds = array<i64: 32, 32>}, {pipeline_mode = #tpu.pipeline_mode<synchronous>, transform_indices = @transform_3, window_bounds = array<i64: 32, 128>}, {pipeline_mode = #tpu.pipeline_mode<synchronous>, transform_indices = @transform_4, window_bounds = array<i64: 128, 32>}, {pipeline_mode = #tpu.pipeline_mode<synchronous>, transform_indices = @transform_5, window_bounds = array<i64: 32, 128>}, {pipeline_mode = #tpu.pipeline_mode<synchronous>, transform_indices = @transform_6, window_bounds = array<i64: 9, 128>}, {transform_indices = @transform_7, window_bounds = array<i64: 1, 8, 128>}]} {
    %c0 = arith.constant 0 : index
    %c0_0 = arith.constant 0 : index
    %c0_1 = arith.constant 0 : index
    %0 = vector.load %arg1[%c0, %c0_0, %c0_1] : memref<1x8x32xbf16, #tpu.memory_space<vmem>>, vector<1x8x32xbf16>
    %1 = vector.shape_cast %0 : vector<1x8x32xbf16> to vector<8x32xbf16>
    %2 = arith.extf %1 : vector<8x32xbf16> to vector<8x32xf32>
    %c0_2 = arith.constant 0 : index
    %c0_3 = arith.constant 0 : index
    %3 = vector.load %arg7[%c0_2, %c0_3] : memref<9x128xf32, #tpu.memory_space<vmem>>, vector<9x128xf32>
    %c0_4 = arith.constant 0 : index
    %c0_5 = arith.constant 0 : index
    %4 = vector.load %arg2[%c0_4, %c0_5] : memref<32x96xbf16, #tpu.memory_space<vmem>>, vector<32x96xbf16>
    %cst = arith.constant dense<0.000000e+00> : vector<8x96xf32>
    %5 = tpu.matmul %1, %4, %cst {dimension_numbers = #tpu.dot_dimension_numbers<[1], [0], [0], [1], [0, 0, 1, 1], [], []>} : vector<8x32xbf16>, vector<32x96xbf16>, vector<8x96xf32> -> vector<8x96xf32>
    %6 = vector.extract_strided_slice %3 {offsets = [0, 0], sizes = [1, 96], strides = [1, 1]} : vector<9x128xf32> to vector<1x96xf32>
    %7 = vector.broadcast %6 : vector<1x96xf32> to vector<8x96xf32>
    %8 = arith.addf %5, %7 : vector<8x96xf32>
    %9 = vector.extract_strided_slice %8 {offsets = [0, 0], sizes = [8, 8], strides = [1, 1]} : vector<8x96xf32> to vector<8x8xf32>
    %10 = arith.truncf %9 : vector<8x8xf32> to vector<8x8xbf16>
    %c0_6 = arith.constant 0 : index
    %c0_7 = arith.constant 0 : index
    %c0_8 = arith.constant 0 : index
    %11 = vector.load %arg9[%c0_6, %c0_7, %c0_8] : memref<4x8x8xbf16, #tpu.memory_space<vmem>>, vector<1x8x8xbf16>
    %12 = vector.shape_cast %11 : vector<1x8x8xbf16> to vector<8x8xbf16>
    %13 = vector.shape_cast %10 : vector<8x8xbf16> to vector<1x8x8xbf16>
    tpu.vector_store %arg9[%c0_6, %c0_7, %c0_8], %13 {strides = array<i32>} : memref<4x8x8xbf16, #tpu.memory_space<vmem>>, vector<1x8x8xbf16>,
    %14 = vector.extract_strided_slice %8 {offsets = [0, 32], sizes = [8, 8], strides = [1, 1]} : vector<8x96xf32> to vector<8x8xf32>
    %15 = arith.truncf %14 : vector<8x8xf32> to vector<8x8xbf16>
    %c0_9 = arith.constant 0 : index
    %c0_10 = arith.constant 0 : index
    %c0_11 = arith.constant 0 : index
    %16 = vector.load %arg10[%c0_9, %c0_10, %c0_11] : memref<4x8x8xbf16, #tpu.memory_space<vmem>>, vector<1x8x8xbf16>
    %17 = vector.shape_cast %16 : vector<1x8x8xbf16> to vector<8x8xbf16>
    %18 = vector.shape_cast %15 : vector<8x8xbf16> to vector<1x8x8xbf16>
    tpu.vector_store %arg10[%c0_9, %c0_10, %c0_11], %18 {strides = array<i32>} : memref<4x8x8xbf16, #tpu.memory_space<vmem>>, vector<1x8x8xbf16>,
    %19 = vector.extract_strided_slice %8 {offsets = [0, 64], sizes = [8, 8], strides = [1, 1]} : vector<8x96xf32> to vector<8x8xf32>
    %20 = arith.truncf %19 : vector<8x8xf32> to vector<8x8xbf16>
    %c0_12 = arith.constant 0 : index
    %c0_13 = arith.constant 0 : index
    %c0_14 = arith.constant 0 : index
    %21 = vector.load %arg11[%c0_12, %c0_13, %c0_14] : memref<4x8x8xbf16, #tpu.memory_space<vmem>>, vector<1x8x8xbf16>
    %22 = vector.shape_cast %21 : vector<1x8x8xbf16> to vector<8x8xbf16>
    %23 = vector.shape_cast %20 : vector<8x8xbf16> to vector<1x8x8xbf16>
    tpu.vector_store %arg11[%c0_12, %c0_13, %c0_14], %23 {strides = array<i32>} : memref<4x8x8xbf16, #tpu.memory_space<vmem>>, vector<1x8x8xbf16>,
    %24 = vector.extract_strided_slice %8 {offsets = [0, 8], sizes = [8, 8], strides = [1, 1]} : vector<8x96xf32> to vector<8x8xf32>
    %25 = arith.truncf %24 : vector<8x8xf32> to vector<8x8xbf16>
    %c1 = arith.constant 1 : index
    %c0_15 = arith.constant 0 : index
    %c0_16 = arith.constant 0 : index
    %26 = vector.load %arg9[%c1, %c0_15, %c0_16] : memref<4x8x8xbf16, #tpu.memory_space<vmem>>, vector<1x8x8xbf16>
    %27 = vector.shape_cast %26 : vector<1x8x8xbf16> to vector<8x8xbf16>
    %28 = vector.shape_cast %25 : vector<8x8xbf16> to vector<1x8x8xbf16>
    tpu.vector_store %arg9[%c1, %c0_15, %c0_16], %28 {strides = array<i32>} : memref<4x8x8xbf16, #tpu.memory_space<vmem>>, vector<1x8x8xbf16>,
    %29 = vector.extract_strided_slice %8 {offsets = [0, 40], sizes = [8, 8], strides = [1, 1]} : vector<8x96xf32> to vector<8x8xf32>
    %30 = arith.truncf %29 : vector<8x8xf32> to vector<8x8xbf16>
    %c1_17 = arith.constant 1 : index
    %c0_18 = arith.constant 0 : index
    %c0_19 = arith.constant 0 : index
    %31 = vector.load %arg10[%c1_17, %c0_18, %c0_19] : memref<4x8x8xbf16, #tpu.memory_space<vmem>>, vector<1x8x8xbf16>
    %32 = vector.shape_cast %31 : vector<1x8x8xbf16> to vector<8x8xbf16>
    %33 = vector.shape_cast %30 : vector<8x8xbf16> to vector<1x8x8xbf16>
    tpu.vector_store %arg10[%c1_17, %c0_18, %c0_19], %33 {strides = array<i32>} : memref<4x8x8xbf16, #tpu.memory_space<vmem>>, vector<1x8x8xbf16>,
    %34 = vector.extract_strided_slice %8 {offsets = [0, 72], sizes = [8, 8], strides = [1, 1]} : vector<8x96xf32> to vector<8x8xf32>
    %35 = arith.truncf %34 : vector<8x8xf32> to vector<8x8xbf16>
    %c1_20 = arith.constant 1 : index
    %c0_21 = arith.constant 0 : index
    %c0_22 = arith.constant 0 : index
    %36 = vector.load %arg11[%c1_20, %c0_21, %c0_22] : memref<4x8x8xbf16, #tpu.memory_space<vmem>>, vector<1x8x8xbf16>
    %37 = vector.shape_cast %36 : vector<1x8x8xbf16> to vector<8x8xbf16>
    %38 = vector.shape_cast %35 : vector<8x8xbf16> to vector<1x8x8xbf16>
    tpu.vector_store %arg11[%c1_20, %c0_21, %c0_22], %38 {strides = array<i32>} : memref<4x8x8xbf16, #tpu.memory_space<vmem>>, vector<1x8x8xbf16>,
    %39 = vector.extract_strided_slice %8 {offsets = [0, 16], sizes = [8, 8], strides = [1, 1]} : vector<8x96xf32> to vector<8x8xf32>
    %40 = arith.truncf %39 : vector<8x8xf32> to vector<8x8xbf16>
    %c2 = arith.constant 2 : index
    %c0_23 = arith.constant 0 : index
    %c0_24 = arith.constant 0 : index
    %41 = vector.load %arg9[%c2, %c0_23, %c0_24] : memref<4x8x8xbf16, #tpu.memory_space<vmem>>, vector<1x8x8xbf16>
    %42 = vector.shape_cast %41 : vector<1x8x8xbf16> to vector<8x8xbf16>
    %43 = vector.shape_cast %40 : vector<8x8xbf16> to vector<1x8x8xbf16>
    tpu.vector_store %arg9[%c2, %c0_23, %c0_24], %43 {strides = array<i32>} : memref<4x8x8xbf16, #tpu.memory_space<vmem>>, vector<1x8x8xbf16>,
    %44 = vector.extract_strided_slice %8 {offsets = [0, 48], sizes = [8, 8], strides = [1, 1]} : vector<8x96xf32> to vector<8x8xf32>
    %45 = arith.truncf %44 : vector<8x8xf32> to vector<8x8xbf16>
    %c2_25 = arith.constant 2 : index
    %c0_26 = arith.constant 0 : index
    %c0_27 = arith.constant 0 : index
    %46 = vector.load %arg10[%c2_25, %c0_26, %c0_27] : memref<4x8x8xbf16, #tpu.memory_space<vmem>>, vector<1x8x8xbf16>
    %47 = vector.shape_cast %46 : vector<1x8x8xbf16> to vector<8x8xbf16>
    %48 = vector.shape_cast %45 : vector<8x8xbf16> to vector<1x8x8xbf16>
    tpu.vector_store %arg10[%c2_25, %c0_26, %c0_27], %48 {strides = array<i32>} : memref<4x8x8xbf16, #tpu.memory_space<vmem>>, vector<1x8x8xbf16>,
    %49 = vector.extract_strided_slice %8 {offsets = [0, 80], sizes = [8, 8], strides = [1, 1]} : vector<8x96xf32> to vector<8x8xf32>
    %50 = arith.truncf %49 : vector<8x8xf32> to vector<8x8xbf16>
    %c2_28 = arith.constant 2 : index
    %c0_29 = arith.constant 0 : index
    %c0_30 = arith.constant 0 : index
    %51 = vector.load %arg11[%c2_28, %c0_29, %c0_30] : memref<4x8x8xbf16, #tpu.memory_space<vmem>>, vector<1x8x8xbf16>
    %52 = vector.shape_cast %51 : vector<1x8x8xbf16> to vector<8x8xbf16>
    %53 = vector.shape_cast %50 : vector<8x8xbf16> to vector<1x8x8xbf16>
    tpu.vector_store %arg11[%c2_28, %c0_29, %c0_30], %53 {strides = array<i32>} : memref<4x8x8xbf16, #tpu.memory_space<vmem>>, vector<1x8x8xbf16>,
    %54 = vector.extract_strided_slice %8 {offsets = [0, 24], sizes = [8, 8], strides = [1, 1]} : vector<8x96xf32> to vector<8x8xf32>
    %55 = arith.truncf %54 : vector<8x8xf32> to vector<8x8xbf16>
    %c3 = arith.constant 3 : index
    %c0_31 = arith.constant 0 : index
    %c0_32 = arith.constant 0 : index
    %56 = vector.load %arg9[%c3, %c0_31, %c0_32] : memref<4x8x8xbf16, #tpu.memory_space<vmem>>, vector<1x8x8xbf16>
    %57 = vector.shape_cast %56 : vector<1x8x8xbf16> to vector<8x8xbf16>
    %58 = vector.shape_cast %55 : vector<8x8xbf16> to vector<1x8x8xbf16>
    tpu.vector_store %arg9[%c3, %c0_31, %c0_32], %58 {strides = array<i32>} : memref<4x8x8xbf16, #tpu.memory_space<vmem>>, vector<1x8x8xbf16>,
    %59 = vector.extract_strided_slice %8 {offsets = [0, 56], sizes = [8, 8], strides = [1, 1]} : vector<8x96xf32> to vector<8x8xf32>
    %60 = arith.truncf %59 : vector<8x8xf32> to vector<8x8xbf16>
    %c3_33 = arith.constant 3 : index
    %c0_34 = arith.constant 0 : index
    %c0_35 = arith.constant 0 : index
    %61 = vector.load %arg10[%c3_33, %c0_34, %c0_35] : memref<4x8x8xbf16, #tpu.memory_space<vmem>>, vector<1x8x8xbf16>
    %62 = vector.shape_cast %61 : vector<1x8x8xbf16> to vector<8x8xbf16>
    %63 = vector.shape_cast %60 : vector<8x8xbf16> to vector<1x8x8xbf16>
    tpu.vector_store %arg10[%c3_33, %c0_34, %c0_35], %63 {strides = array<i32>} : memref<4x8x8xbf16, #tpu.memory_space<vmem>>, vector<1x8x8xbf16>,
    %64 = vector.extract_strided_slice %8 {offsets = [0, 88], sizes = [8, 8], strides = [1, 1]} : vector<8x96xf32> to vector<8x8xf32>
    %65 = arith.truncf %64 : vector<8x8xf32> to vector<8x8xbf16>
    %c3_36 = arith.constant 3 : index
    %c0_37 = arith.constant 0 : index
    %c0_38 = arith.constant 0 : index
    %66 = vector.load %arg11[%c3_36, %c0_37, %c0_38] : memref<4x8x8xbf16, #tpu.memory_space<vmem>>, vector<1x8x8xbf16>
    %67 = vector.shape_cast %66 : vector<1x8x8xbf16> to vector<8x8xbf16>
    %68 = vector.shape_cast %65 : vector<8x8xbf16> to vector<1x8x8xbf16>
    tpu.vector_store %arg11[%c3_36, %c0_37, %c0_38], %68 {strides = array<i32>} : memref<4x8x8xbf16, #tpu.memory_space<vmem>>, vector<1x8x8xbf16>,
    %c0_39 = arith.constant 0 : index
    %c0_40 = arith.constant 0 : index
    %c0_41 = arith.constant 0 : index
    %69 = vector.load %arg9[%c0_39, %c0_40, %c0_41] : memref<4x8x8xbf16, #tpu.memory_space<vmem>>, vector<4x8x8xbf16>
    %c0_42 = arith.constant 0 : index
    %c0_43 = arith.constant 0 : index
    %c0_44 = arith.constant 0 : index
    %70 = vector.load %arg10[%c0_42, %c0_43, %c0_44] : memref<4x8x8xbf16, #tpu.memory_space<vmem>>, vector<4x8x8xbf16>
    "tpu.trace_start"() <{level = 10 : i32, message = "hsd,htd->hst"}> : () -> ()
    %cst_45 = arith.constant dense<0.000000e+00> : vector<4x8x8xf32>
    %71 = tpu.matmul %69, %70, %cst_45 {dimension_numbers = #tpu.dot_dimension_numbers<[2], [2], [1], [1], [0, 0, 0, 1, 1, 1], [0], [0]>} : vector<4x8x8xbf16>, vector<4x8x8xbf16>, vector<4x8x8xf32> -> vector<4x8x8xf32>
    "tpu.trace_stop"() : () -> ()
    %cst_46 = arith.constant dense<0xFF800000> : vector<4x8xf32>
    %72 = vector.multi_reduction <maximumf>, %71, %cst_46 [2] : vector<4x8x8xf32> to vector<4x8xf32>
    %73 = vector.shape_cast %72 : vector<4x8xf32> to vector<4x8x1xf32>
    %74 = vector.broadcast %73 : vector<4x8x1xf32> to vector<4x8x8xf32>
    %75 = arith.subf %71, %74 : vector<4x8x8xf32>
    %76 = math.exp %75 : vector<4x8x8xf32>
    %cst_47 = arith.constant dense<0.000000e+00> : vector<4x8xf32>
    %77 = vector.multi_reduction <add>, %76, %cst_47 [2] : vector<4x8x8xf32> to vector<4x8xf32>
    %78 = vector.shape_cast %77 : vector<4x8xf32> to vector<4x8x1xf32>
    %79 = tpu.reciprocal %78 {approx = true} : vector<4x8x1xf32> -> vector<4x8x1xf32>
    %80 = vector.broadcast %79 : vector<4x8x1xf32> to vector<4x8x8xf32>
    %81 = arith.mulf %76, %80 : vector<4x8x8xf32>
    %82 = arith.truncf %81 : vector<4x8x8xf32> to vector<4x8x8xbf16>
    %c0_48 = arith.constant 0 : index
    %c0_49 = arith.constant 0 : index
    %c0_50 = arith.constant 0 : index
    %83 = vector.load %arg11[%c0_48, %c0_49, %c0_50] : memref<4x8x8xbf16, #tpu.memory_space<vmem>>, vector<4x8x8xbf16>
    "tpu.trace_start"() <{level = 10 : i32, message = "hst,htd->hsd"}> : () -> ()
    %cst_51 = arith.constant dense<0.000000e+00> : vector<4x8x8xf32>
    %84 = tpu.matmul %82, %83, %cst_51 {dimension_numbers = #tpu.dot_dimension_numbers<[2], [1], [1], [2], [0, 0, 0, 1, 1, 2], [0], [0]>} : vector<4x8x8xbf16>, vector<4x8x8xbf16>, vector<4x8x8xf32> -> vector<4x8x8xf32>
    "tpu.trace_stop"() : () -> ()
    %85 = vector.extract_strided_slice %84 {offsets = [0, 0, 0], sizes = [1, 8, 8], strides = [1, 1, 1]} : vector<4x8x8xf32> to vector<1x8x8xf32>
    %86 = vector.shape_cast %85 : vector<1x8x8xf32> to vector<8x8xf32>
    %87 = arith.truncf %86 : vector<8x8xf32> to vector<8x8xbf16>
    %c0_52 = arith.constant 0 : index
    %c0_53 = arith.constant 0 : index
    %88 = vector.load %arg12[%c0_52, %c0_53] : memref<8x32xbf16, #tpu.memory_space<vmem>>, vector<8x8xbf16>
    tpu.vector_store %arg12[%c0_52, %c0_53], %87 {strides = array<i32>} : memref<8x32xbf16, #tpu.memory_space<vmem>>, vector<8x8xbf16>,
    %89 = vector.extract_strided_slice %84 {offsets = [1, 0, 0], sizes = [1, 8, 8], strides = [1, 1, 1]} : vector<4x8x8xf32> to vector<1x8x8xf32>
    %90 = vector.shape_cast %89 : vector<1x8x8xf32> to vector<8x8xf32>
    %91 = arith.truncf %90 : vector<8x8xf32> to vector<8x8xbf16>
    %c0_54 = arith.constant 0 : index
    %c8 = arith.constant 8 : index
    %92 = vector.load %arg12[%c0_54, %c8] : memref<8x32xbf16, #tpu.memory_space<vmem>>, vector<8x8xbf16>
    tpu.vector_store %arg12[%c0_54, %c8], %91 {strides = array<i32>} : memref<8x32xbf16, #tpu.memory_space<vmem>>, vector<8x8xbf16>,
    %93 = vector.extract_strided_slice %84 {offsets = [2, 0, 0], sizes = [1, 8, 8], strides = [1, 1, 1]} : vector<4x8x8xf32> to vector<1x8x8xf32>
    %94 = vector.shape_cast %93 : vector<1x8x8xf32> to vector<8x8xf32>
    %95 = arith.truncf %94 : vector<8x8xf32> to vector<8x8xbf16>
    %c0_55 = arith.constant 0 : index
    %c16 = arith.constant 16 : index
    %96 = vector.load %arg12[%c0_55, %c16] : memref<8x32xbf16, #tpu.memory_space<vmem>>, vector<8x8xbf16>
    tpu.vector_store %arg12[%c0_55, %c16], %95 {strides = array<i32>} : memref<8x32xbf16, #tpu.memory_space<vmem>>, vector<8x8xbf16>,
    %97 = vector.extract_strided_slice %84 {offsets = [3, 0, 0], sizes = [1, 8, 8], strides = [1, 1, 1]} : vector<4x8x8xf32> to vector<1x8x8xf32>
    %98 = vector.shape_cast %97 : vector<1x8x8xf32> to vector<8x8xf32>
    %99 = arith.truncf %98 : vector<8x8xf32> to vector<8x8xbf16>
    %c0_56 = arith.constant 0 : index
    %c24 = arith.constant 24 : index
    %100 = vector.load %arg12[%c0_56, %c24] : memref<8x32xbf16, #tpu.memory_space<vmem>>, vector<8x8xbf16>
    tpu.vector_store %arg12[%c0_56, %c24], %99 {strides = array<i32>} : memref<8x32xbf16, #tpu.memory_space<vmem>>, vector<8x8xbf16>,
    %c0_57 = arith.constant 0 : index
    %c0_58 = arith.constant 0 : index
    %101 = vector.load %arg12[%c0_57, %c0_58] : memref<8x32xbf16, #tpu.memory_space<vmem>>, vector<8x32xbf16>
    %c0_59 = arith.constant 0 : index
    %c0_60 = arith.constant 0 : index
    %102 = vector.load %arg3[%c0_59, %c0_60] : memref<32x32xbf16, #tpu.memory_space<vmem>>, vector<32x32xbf16>
    %cst_61 = arith.constant dense<0.000000e+00> : vector<8x32xf32>
    %103 = tpu.matmul %101, %102, %cst_61 {dimension_numbers = #tpu.dot_dimension_numbers<[1], [0], [0], [1], [0, 0, 1, 1], [], []>} : vector<8x32xbf16>, vector<32x32xbf16>, vector<8x32xf32> -> vector<8x32xf32>
    %104 = vector.extract_strided_slice %3 {offsets = [1, 0], sizes = [1, 32], strides = [1, 1]} : vector<9x128xf32> to vector<1x32xf32>
    %105 = vector.broadcast %104 : vector<1x32xf32> to vector<8x32xf32>
    %106 = arith.addf %103, %105 : vector<8x32xf32>
    %107 = arith.addf %2, %106 : vector<8x32xf32>
    %c0_62 = arith.constant 0 : index
    %c0_63 = arith.constant 0 : index
    %108 = vector.load %arg13[%c0_62, %c0_63] : memref<8x32xf32, #tpu.memory_space<vmem>>, vector<8x32xf32>
    tpu.vector_store %arg13[%c0_62, %c0_63], %107 {strides = array<i32>} : memref<8x32xf32, #tpu.memory_space<vmem>>, vector<8x32xf32>,
    %109 = vector.extract_strided_slice %3 {offsets = [2, 0], sizes = [1, 32], strides = [1, 1]} : vector<9x128xf32> to vector<1x32xf32>
    %110 = vector.extract_strided_slice %3 {offsets = [3, 0], sizes = [1, 32], strides = [1, 1]} : vector<9x128xf32> to vector<1x32xf32>
    %111 = vector.extract_strided_slice %3 {offsets = [4, 0], sizes = [1, 32], strides = [1, 1]} : vector<9x128xf32> to vector<1x32xf32>
    %112 = vector.extract_strided_slice %3 {offsets = [5, 0], sizes = [1, 32], strides = [1, 1]} : vector<9x128xf32> to vector<1x32xf32>
    %113 = vector.extract_strided_slice %3 {offsets = [6, 0], sizes = [1, 128], strides = [1, 1]} : vector<9x128xf32> to vector<1x128xf32>
    %114 = vector.extract_strided_slice %3 {offsets = [7, 0], sizes = [1, 32], strides = [1, 1]} : vector<9x128xf32> to vector<1x32xf32>
    %115 = vector.extract_strided_slice %3 {offsets = [8, 0], sizes = [1, 128], strides = [1, 1]} : vector<9x128xf32> to vector<1x128xf32>
    %c0_i32 = arith.constant 0 : i32
    %c8_i32 = arith.constant 8 : i32
    %116 = arith.muli %c0_i32, %c8_i32 : i32
    %117 = tpu.assume_multiple %116, 8 : i32
    %118 = arith.index_cast %117 : i32 to index
    %c0_64 = arith.constant 0 : index
    %119 = vector.load %arg13[%118, %c0_64] : memref<8x32xf32, #tpu.memory_space<vmem>>, vector<8x32xf32>
    %cst_65 = arith.constant dense<0.000000e+00> : vector<8xf32>
    %120 = vector.multi_reduction <add>, %119, %cst_65 [1] : vector<8x32xf32> to vector<8xf32>
    %121 = vector.shape_cast %120 : vector<8xf32> to vector<8x1xf32>
    %cst_66 = arith.constant 3.200000e+01 : f32
    %122 = vector.broadcast %cst_66 : f32 to vector<8x1xf32>
    %123 = arith.divf %121, %122 : vector<8x1xf32>
    %124 = vector.broadcast %123 : vector<8x1xf32> to vector<8x32xf32>
    %125 = arith.subf %119, %124 : vector<8x32xf32>
    %126 = arith.mulf %125, %125 : vector<8x32xf32>
    %cst_67 = arith.constant dense<0.000000e+00> : vector<8xf32>
    %127 = vector.multi_reduction <add>, %126, %cst_67 [1] : vector<8x32xf32> to vector<8xf32>
    %128 = vector.shape_cast %127 : vector<8xf32> to vector<8x1xf32>
    %cst_68 = arith.constant 3.200000e+01 : f32
    %129 = vector.broadcast %cst_68 : f32 to vector<8x1xf32>
    %130 = arith.divf %128, %129 : vector<8x1xf32>
    %131 = vector.broadcast %123 : vector<8x1xf32> to vector<8x32xf32>
    %132 = arith.subf %119, %131 : vector<8x32xf32>
    %cst_69 = arith.constant 9.99999974E-6 : f32
    %133 = vector.broadcast %cst_69 : f32 to vector<8x1xf32>
    %134 = arith.addf %130, %133 : vector<8x1xf32>
    %135 = math.rsqrt %134 : vector<8x1xf32>
    %136 = vector.broadcast %135 : vector<8x1xf32> to vector<8x32xf32>
    %137 = arith.mulf %132, %136 : vector<8x32xf32>
    %138 = vector.broadcast %109 : vector<1x32xf32> to vector<8x32xf32>
    %139 = arith.mulf %137, %138 : vector<8x32xf32>
    %140 = vector.broadcast %110 : vector<1x32xf32> to vector<8x32xf32>
    %141 = arith.addf %139, %140 : vector<8x32xf32>
    %142 = arith.truncf %141 : vector<8x32xf32> to vector<8x32xbf16>
    %c0_70 = arith.constant 0 : index
    %c0_71 = arith.constant 0 : index
    %143 = vector.load %arg4[%c0_70, %c0_71] : memref<32x128xbf16, #tpu.memory_space<vmem>>, vector<32x128xbf16>
    %cst_72 = arith.constant dense<0.000000e+00> : vector<8x128xf32>
    %144 = tpu.matmul %142, %143, %cst_72 {dimension_numbers = #tpu.dot_dimension_numbers<[1], [0], [0], [1], [0, 0, 1, 1], [], []>} : vector<8x32xbf16>, vector<32x128xbf16>, vector<8x128xf32> -> vector<8x128xf32>
    %145 = vector.broadcast %113 : vector<1x128xf32> to vector<8x128xf32>
    %146 = arith.addf %144, %145 : vector<8x128xf32>
    %147 = arith.mulf %146, %146 : vector<8x128xf32>
    %148 = arith.mulf %146, %147 : vector<8x128xf32>
    %cst_73 = arith.constant 4.471500e-02 : f32
    %149 = vector.broadcast %cst_73 : f32 to vector<8x128xf32>
    %150 = arith.mulf %149, %148 : vector<8x128xf32>
    %151 = arith.addf %146, %150 : vector<8x128xf32>
    %cst_74 = arith.constant 0.797884583 : f32
    %152 = vector.broadcast %cst_74 : f32 to vector<8x128xf32>
    %153 = arith.mulf %152, %151 : vector<8x128xf32>
    %154 = math.tanh %153 : vector<8x128xf32>
    %cst_75 = arith.constant 1.000000e+00 : f32
    %155 = vector.broadcast %cst_75 : f32 to vector<8x128xf32>
    %156 = arith.addf %155, %154 : vector<8x128xf32>
    %cst_76 = arith.constant 5.000000e-01 : f32
    %157 = vector.broadcast %cst_76 : f32 to vector<8x128xf32>
    %158 = arith.mulf %157, %156 : vector<8x128xf32>
    %159 = arith.mulf %146, %158 : vector<8x128xf32>
    %160 = arith.truncf %159 : vector<8x128xf32> to vector<8x128xbf16>
    %c0_77 = arith.constant 0 : index
    %c0_78 = arith.constant 0 : index
    %161 = vector.load %arg5[%c0_77, %c0_78] : memref<128x32xbf16, #tpu.memory_space<vmem>>, vector<128x32xbf16>
    %cst_79 = arith.constant dense<0.000000e+00> : vector<8x32xf32>
    %162 = tpu.matmul %160, %161, %cst_79 {dimension_numbers = #tpu.dot_dimension_numbers<[1], [0], [0], [1], [0, 0, 1, 1], [], []>} : vector<8x128xbf16>, vector<128x32xbf16>, vector<8x32xf32> -> vector<8x32xf32>
    %163 = vector.broadcast %114 : vector<1x32xf32> to vector<8x32xf32>
    %164 = arith.addf %162, %163 : vector<8x32xf32>
    %165 = arith.addf %141, %164 : vector<8x32xf32>
    %cst_80 = arith.constant dense<0.000000e+00> : vector<8xf32>
    %166 = vector.multi_reduction <add>, %165, %cst_80 [1] : vector<8x32xf32> to vector<8xf32>
    %167 = vector.shape_cast %166 : vector<8xf32> to vector<8x1xf32>
    %cst_81 = arith.constant 3.200000e+01 : f32
    %168 = vector.broadcast %cst_81 : f32 to vector<8x1xf32>
    %169 = arith.divf %167, %168 : vector<8x1xf32>
    %170 = vector.broadcast %169 : vector<8x1xf32> to vector<8x32xf32>
    %171 = arith.subf %165, %170 : vector<8x32xf32>
    %172 = arith.mulf %171, %171 : vector<8x32xf32>
    %cst_82 = arith.constant dense<0.000000e+00> : vector<8xf32>
    %173 = vector.multi_reduction <add>, %172, %cst_82 [1] : vector<8x32xf32> to vector<8xf32>
    %174 = vector.shape_cast %173 : vector<8xf32> to vector<8x1xf32>
    %cst_83 = arith.constant 3.200000e+01 : f32
    %175 = vector.broadcast %cst_83 : f32 to vector<8x1xf32>
    %176 = arith.divf %174, %175 : vector<8x1xf32>
    %177 = vector.broadcast %169 : vector<8x1xf32> to vector<8x32xf32>
    %178 = arith.subf %165, %177 : vector<8x32xf32>
    %cst_84 = arith.constant 9.99999974E-6 : f32
    %179 = vector.broadcast %cst_84 : f32 to vector<8x1xf32>
    %180 = arith.addf %176, %179 : vector<8x1xf32>
    %181 = math.rsqrt %180 : vector<8x1xf32>
    %182 = vector.broadcast %181 : vector<8x1xf32> to vector<8x32xf32>
    %183 = arith.mulf %178, %182 : vector<8x32xf32>
    %184 = vector.broadcast %111 : vector<1x32xf32> to vector<8x32xf32>
    %185 = arith.mulf %183, %184 : vector<8x32xf32>
    %186 = vector.broadcast %112 : vector<1x32xf32> to vector<8x32xf32>
    %187 = arith.addf %185, %186 : vector<8x32xf32>
    %188 = arith.truncf %187 : vector<8x32xf32> to vector<8x32xbf16>
    %c0_85 = arith.constant 0 : index
    %c0_86 = arith.constant 0 : index
    %189 = vector.load %arg6[%c0_85, %c0_86] : memref<32x128xbf16, #tpu.memory_space<vmem>>, vector<32x128xbf16>
    %cst_87 = arith.constant dense<0.000000e+00> : vector<8x128xf32>
    %190 = tpu.matmul %188, %189, %cst_87 {dimension_numbers = #tpu.dot_dimension_numbers<[1], [0], [0], [1], [0, 0, 1, 1], [], []>} : vector<8x32xbf16>, vector<32x128xbf16>, vector<8x128xf32> -> vector<8x128xf32>
    %191 = vector.broadcast %115 : vector<1x128xf32> to vector<8x128xf32>
    %192 = arith.addf %190, %191 : vector<8x128xf32>
    %c0_88 = arith.constant 0 : index
    %193 = arith.index_cast %117 : i32 to index
    %c0_89 = arith.constant 0 : index
    %194 = vector.load %arg8[%c0_88, %193, %c0_89] : memref<1x8x128xf32, #tpu.memory_space<vmem>>, vector<1x8x128xf32>
    %195 = vector.shape_cast %194 : vector<1x8x128xf32> to vector<8x128xf32>
    %196 = vector.shape_cast %192 : vector<8x128xf32> to vector<1x8x128xf32>
    tpu.vector_store %arg8[%c0_88, %193, %c0_89], %196 {strides = array<i32>} : memref<1x8x128xf32, #tpu.memory_space<vmem>>, vector<1x8x128xf32>,
    %c1_i32 = arith.constant 1 : i32
    return
  }
  func.func @transform_0(%arg0: i32) -> (i32, i32, i32) {
    %c0_i32 = arith.constant 0 : i32
    %c0_i32_0 = arith.constant 0 : i32
    %c0_i32_1 = arith.constant 0 : i32
    return %arg0, %c0_i32, %c0_i32_0 : i32, i32, i32
  }
  func.func @transform_1(%arg0: i32) -> (i32, i32) {
    %c0_i32 = arith.constant 0 : i32
    %c0_i32_0 = arith.constant 0 : i32
    %c0_i32_1 = arith.constant 0 : i32
    return %c0_i32, %c0_i32_0 : i32, i32
  }
  func.func @transform_2(%arg0: i32) -> (i32, i32) {
    %c0_i32 = arith.constant 0 : i32
    %c0_i32_0 = arith.constant 0 : i32
    %c0_i32_1 = arith.constant 0 : i32
    return %c0_i32, %c0_i32_0 : i32, i32
  }
  func.func @transform_3(%arg0: i32) -> (i32, i32) {
    %c0_i32 = arith.constant 0 : i32
    %c0_i32_0 = arith.constant 0 : i32
    %c0_i32_1 = arith.constant 0 : i32
    return %c0_i32, %c0_i32_0 : i32, i32
  }
  func.func @transform_4(%arg0: i32) -> (i32, i32) {
    %c0_i32 = arith.constant 0 : i32
    %c0_i32_0 = arith.constant 0 : i32
    %c0_i32_1 = arith.constant 0 : i32
    return %c0_i32, %c0_i32_0 : i32, i32
  }
  func.func @transform_5(%arg0: i32) -> (i32, i32) {
    %c0_i32 = arith.constant 0 : i32
    %c0_i32_0 = arith.constant 0 : i32
    %c0_i32_1 = arith.constant 0 : i32
    return %c0_i32, %c0_i32_0 : i32, i32
  }
  func.func @transform_6(%arg0: i32) -> (i32, i32) {
    %c0_i32 = arith.constant 0 : i32
    %c0_i32_0 = arith.constant 0 : i32
    %c0_i32_1 = arith.constant 0 : i32
    return %c0_i32, %c0_i32_0 : i32, i32
  }
  func.func @transform_7(%arg0: i32) -> (i32, i32, i32) {
    %c0_i32 = arith.constant 0 : i32
    %c0_i32_0 = arith.constant 0 : i32
    %c0_i32_1 = arith.constant 0 : i32
    return %arg0, %c0_i32, %c0_i32_0 : i32, i32, i32
  }
}

</mosaic_0001>

<llo_original>
// kernel: tpu_custom_call.1
$region0: #{tpu_custom_call.1}
  #allocation0 [shape = 'u32[]', space=smem, size = 0x4, offset = 0x4, fixed_abs, tag = 'smem constant byte address 0x4 - core index']
  #allocation1 [shape = 'u32[72,128]{1,0:T(1,128)}', space=vmem, size = 0x9000, scoped, tag = 'internal scratch']
  #allocation2 [shape = 'bf16[4,8,8]{2,1,0:T(8,128)(2,1)}', space=vmem, size = 0x2000, scoped, tag = 'scratch operand']
  #allocation3 [shape = 'bf16[4,8,8]{2,1,0:T(8,128)(2,1)}', space=vmem, size = 0x2000, scoped, tag = 'scratch operand']
  #allocation4 [shape = 'bf16[4,8,8]{2,1,0:T(8,128)(2,1)}', space=vmem, size = 0x2000, scoped, tag = 'scratch operand']
  #allocation5 [shape = 'bf16[8,32]{1,0:T(8,128)(2,1)}', space=vmem, size = 0x800, scoped, tag = 'scratch operand']
  #allocation6 [shape = 'f32[8,32]{1,0:T(8,128)}', space=vmem, size = 0x1000, scoped, tag = 'scratch operand']
  %s0 = inlined_call_operand.hbm [shape: bf16[2,8,32], index: 0, kind: input, shape index: {}]
  %s1 = inlined_call_operand.vmem [shape: bf16[32,96], index: 1, kind: input, shape index: {}]
  %s2 = inlined_call_operand.vmem [shape: bf16[32,32], index: 2, kind: input, shape index: {}]
  %s3 = inlined_call_operand.vmem [shape: bf16[32,128], index: 3, kind: input, shape index: {}]
  %s4 = inlined_call_operand.vmem [shape: bf16[128,32], index: 4, kind: input, shape index: {}]
  %s5 = inlined_call_operand.vmem [shape: bf16[32,128], index: 5, kind: input, shape index: {}]
  %s6 = inlined_call_operand.vmem [shape: f32[9,128], index: 6, kind: input, shape index: {}]
  %s7 = inlined_call_operand.hbm [shape: f32[2,8,128], index: 7, kind: output, shape index: {}]
  %s8 = sld [smem:[#allocation0]]
  $region65: #{tpu_custom_call.1} parent=0
    _
  %s10 = ssub.s32 1, %s8
  %s11 = scalar_select 0, %s10, %s8
  $region1: #{tpu_custom_call.1} parent=0
    #allocation7 [shape = 'u8[4096]{0}', space=vmem, size = 0x1000, scoped, tag = 'input window, operand 0']
    #allocation8 [shape = 's32[2]{0}', space=sflag, size = 0x8, scoped, tag = 'scoped memory for tpu_custom_call.1']
    #allocation9 [shape = 's32[2]{0}', space=sflag, size = 0x8, scoped, tag = 'scoped memory for tpu_custom_call.1']
    #allocation10 [shape = 'u8[8192]{0}', space=vmem, size = 0x2000, scoped, tag = 'output window, operand 0']
    %12 = vsyncpa [#allocation8], 0
    %s13 = scalar_lea.sflag [#allocation8], 1
    %14 = vsyncpa %s13, 0
    %15 = vsyncpa [#allocation9], 0
    %s16 = scalar_lea.sflag [#allocation9], 1
    %17 = vsyncpa %s16, 0
    loop: start=0, step=1, limit=4
    $region2: #{tpu_custom_call.1} parent=1 // loop_pre_header
      _
    $region3: #{tpu_custom_call.1} parent=1 // loop_header
      %s19 = sphi 0, %s23
      %p20 = scmp.ge.s32.totalorder %s19, 4
      %s29 = sphi 0, %s31
      %s32 = sphi 0, %s29
      %s33 = sphi 0, %s32
      %s49 = sphi 0, %s33
      %s53 = sphi 0, %s53
      %s55 = sphi 0, %s53
      %s56 = sphi 0, %s55
      %s70 = sphi 0, %s56
      %s74 = sphi 0, %s74
      %s76 = sphi 0, %s74
      %s77 = sphi 0, %s76
      %s91 = sphi 0, %s77
      %s95 = sphi 0, %s95
      %s97 = sphi 0, %s95
      %s98 = sphi 0, %s97
      %s112 = sphi 0, %s98
      %s116 = sphi 0, %s116
      %s118 = sphi 0, %s116
      %s119 = sphi 0, %s118
      %s133 = sphi 0, %s119
      %s137 = sphi 0, %s137
      %s139 = sphi 0, %s137
      %s140 = sphi 0, %s139
      %s154 = sphi 0, %s140
      %s158 = sphi 0, %s158
      %s160 = sphi 0, %s158
      %s161 = sphi 0, %s160
      %s175 = sphi 0, %s161
      %s181 = sphi 0, %s183
      %s184 = sphi 0, %s181
      %s185 = sphi 0, %s184
      %s201 = sphi 0, %s185
    $region4: #{tpu_custom_call.1} parent=1 // loop_header_branch
      %22 = sbr.rel (%p20) target = $region8
    $region5: #{tpu_custom_call.1} parent=1 // loop_body
      %s24 = ssub.s32 %s19, 1
      %s25 = ssub.s32 %s19, 2
      %s26 = sadd.s32 %s19, 1
      %s27 = ssub.s32 %s19, %s26
      %p28 = scmp.eq.s32.totalorder %s27, 0
      %s30 = sadd.s32 %s29, 1
      %s31 = scalar_select %p28, %s29, %s30
      %p34 = pneg %p28
      %p35 = scmp.eq.s32.totalorder %s19, 1
      %p36 = por %p34, %p35
      %p37 = scmp.ne.s32.totalorder %s29, %s32
      %p38 = scmp.eq.s32.totalorder %s19, 0
      %p39 = por %p37, %p38
      %p40 = scmp.ne.s32.totalorder %s29, %s32
      %p41 = scmp.eq.s32.totalorder %s24, 1
      %p42 = por %p40, %p41
      %p43 = scmp.ne.s32.totalorder %s32, %s33
      %p44 = scmp.eq.s32.totalorder %s24, 0
      %p45 = por %p43, %p44
      %p46 = scmp.ne.s32.totalorder %s32, %s33
      %p47 = scmp.eq.s32.totalorder %s25, 1
      %p48 = por %p46, %p47
      %p50 = scmp.ne.s32.totalorder %s33, %s49
      %p51 = scmp.eq.s32.totalorder %s25, 0
      %p52 = por %p50, %p51
      %s54 = sadd.s32 %s53, 1
      %p57 = scmp.eq.s32.totalorder %s19, 1
      %p58 = scmp.ne.s32.totalorder %s53, %s55
      %p59 = scmp.eq.s32.totalorder %s19, 0
      %p60 = por %p58, %p59
      %p61 = scmp.ne.s32.totalorder %s53, %s55
      %p62 = scmp.eq.s32.totalorder %s24, 1
      %p63 = por %p61, %p62
      %p64 = scmp.ne.s32.totalorder %s55, %s56
      %p65 = scmp.eq.s32.totalorder %s24, 0
      %p66 = por %p64, %p65
      %p67 = scmp.ne.s32.totalorder %s55, %s56
      %p68 = scmp.eq.s32.totalorder %s25, 1
      %p69 = por %p67, %p68
      %p71 = scmp.ne.s32.totalorder %s56, %s70
      %p72 = scmp.eq.s32.totalorder %s25, 0
      %p73 = por %p71, %p72
      %s75 = sadd.s32 %s74, 1
      %p78 = scmp.eq.s32.totalorder %s19, 1
      %p79 = scmp.ne.s32.totalorder %s74, %s76
      %p80 = scmp.eq.s32.totalorder %s19, 0
      %p81 = por %p79, %p80
      %p82 = scmp.ne.s32.totalorder %s74, %s76
      %p83 = scmp.eq.s32.totalorder %s24, 1
      %p84 = por %p82, %p83
      %p85 = scmp.ne.s32.totalorder %s76, %s77
      %p86 = scmp.eq.s32.totalorder %s24, 0
      %p87 = por %p85, %p86
      %p88 = scmp.ne.s32.totalorder %s76, %s77
      %p89 = scmp.eq.s32.totalorder %s25, 1
      %p90 = por %p88, %p89
      %p92 = scmp.ne.s32.totalorder %s77, %s91
      %p93 = scmp.eq.s32.totalorder %s25, 0
      %p94 = por %p92, %p93
      %s96 = sadd.s32 %s95, 1
      %p99 = scmp.eq.s32.totalorder %s19, 1
      %p100 = scmp.ne.s32.totalorder %s95, %s97
      %p101 = scmp.eq.s32.totalorder %s19, 0
      %p102 = por %p100, %p101
      %p103 = scmp.ne.s32.totalorder %s95, %s97
      %p104 = scmp.eq.s32.totalorder %s24, 1
      %p105 = por %p103, %p104
      %p106 = scmp.ne.s32.totalorder %s97, %s98
      %p107 = scmp.eq.s32.totalorder %s24, 0
      %p108 = por %p106, %p107
      %p109 = scmp.ne.s32.totalorder %s97, %s98
      %p110 = scmp.eq.s32.totalorder %s25, 1
      %p111 = por %p109, %p110
      %p113 = scmp.ne.s32.totalorder %s98, %s112
      %p114 = scmp.eq.s32.totalorder %s25, 0
      %p115 = por %p113, %p114
      %s117 = sadd.s32 %s116, 1
      %p120 = scmp.eq.s32.totalorder %s19, 1
      %p121 = scmp.ne.s32.totalorder %s116, %s118
      %p122 = scmp.eq.s32.totalorder %s19, 0
      %p123 = por %p121, %p122
      %p124 = scmp.ne.s32.totalorder %s116, %s118
      %p125 = scmp.eq.s32.totalorder %s24, 1
      %p126 = por %p124, %p125
      %p127 = scmp.ne.s32.totalorder %s118, %s119
      %p128 = scmp.eq.s32.totalorder %s24, 0
      %p129 = por %p127, %p128
      %p130 = scmp.ne.s32.totalorder %s118, %s119
      %p131 = scmp.eq.s32.totalorder %s25, 1
      %p132 = por %p130, %p131
      %p134 = scmp.ne.s32.totalorder %s119, %s133
      %p135 = scmp.eq.s32.totalorder %s25, 0
      %p136 = por %p134, %p135
      %s138 = sadd.s32 %s137, 1
      %p141 = scmp.eq.s32.totalorder %s19, 1
      %p142 = scmp.ne.s32.totalorder %s137, %s139
      %p143 = scmp.eq.s32.totalorder %s19, 0
      %p144 = por %p142, %p143
      %p145 = scmp.ne.s32.totalorder %s137, %s139
      %p146 = scmp.eq.s32.totalorder %s24, 1
      %p147 = por %p145, %p146
      %p148 = scmp.ne.s32.totalorder %s139, %s140
      %p149 = scmp.eq.s32.totalorder %s24, 0
      %p150 = por %p148, %p149
      %p151 = scmp.ne.s32.totalorder %s139, %s140
      %p152 = scmp.eq.s32.totalorder %s25, 1
      %p153 = por %p151, %p152
      %p155 = scmp.ne.s32.totalorder %s140, %s154
      %p156 = scmp.eq.s32.totalorder %s25, 0
      %p157 = por %p155, %p156
      %s159 = sadd.s32 %s158, 1
      %p162 = scmp.eq.s32.totalorder %s19, 1
      %p163 = scmp.ne.s32.totalorder %s158, %s160
      %p164 = scmp.eq.s32.totalorder %s19, 0
      %p165 = por %p163, %p164
      %p166 = scmp.ne.s32.totalorder %s158, %s160
      %p167 = scmp.eq.s32.totalorder %s24, 1
      %p168 = por %p166, %p167
      %p169 = scmp.ne.s32.totalorder %s160, %s161
      %p170 = scmp.eq.s32.totalorder %s24, 0
      %p171 = por %p169, %p170
      %p172 = scmp.ne.s32.totalorder %s160, %s161
      %p173 = scmp.eq.s32.totalorder %s25, 1
      %p174 = por %p172, %p173
      %p176 = scmp.ne.s32.totalorder %s161, %s175
      %p177 = scmp.eq.s32.totalorder %s25, 0
      %p178 = por %p176, %p177
      %s179 = ssub.s32 %s19, %s26
      %p180 = scmp.eq.s32.totalorder %s179, 0
      %s182 = sadd.s32 %s181, 1
      %s183 = scalar_select %p180, %s181, %s182
      %p186 = pneg %p180
      %p187 = scmp.eq.s32.totalorder %s19, 1
      %p188 = por %p186, %p187
      %p189 = scmp.ne.s32.totalorder %s181, %s184
      %p190 = scmp.eq.s32.totalorder %s19, 0
      %p191 = por %p189, %p190
      %p192 = scmp.ne.s32.totalorder %s181, %s184
      %p193 = scmp.eq.s32.totalorder %s24, 1
      %p194 = por %p192, %p193
      %p195 = scmp.ne.s32.totalorder %s184, %s185
      %p196 = scmp.eq.s32.totalorder %s24, 0
      %p197 = por %p195, %p196
      %p198 = scmp.ne.s32.totalorder %s184, %s185
      %p199 = scmp.eq.s32.totalorder %s25, 1
      %p200 = por %p198, %p199
      %p202 = scmp.ne.s32.totalorder %s185, %s201
      %p203 = scmp.eq.s32.totalorder %s25, 0
      %p204 = por %p202, %p203
      %p205 = scmp.le.s32.totalorder 1, %s19
      %p206 = scmp.lt.s32.totalorder %s19, 3
      %p207 = pnand %p205, %p206
      %p208 = pneg %p207
      // Predicated region
      $region9: #{tpu_custom_call.1} parent=5 // pred_check
        _
      $region10: #{tpu_custom_call.1} parent=5 // pred_check_branch
        %210 = sbr.rel (%p207) target = $region12
      $region11: #{tpu_custom_call.1} parent=5 // pred_region
        %s211 = ssub.s32 %s19, 1
        // Predicated region
        $region13: #{tpu_custom_call.1} parent=11 // pred_check
          %p212 = pneg %p66
        $region14: #{tpu_custom_call.1} parent=11 // pred_check_branch
          %214 = sbr.rel (%p212) target = $region16
        $region15: #{tpu_custom_call.1} parent=11 // pred_region
          _
        $region16: #{tpu_custom_call.1} parent=11 // pred_fallthru
          _
        // Predicated region
        $region17: #{tpu_custom_call.1} parent=11 // pred_check
          %p215 = pneg %p87
        $region18: #{tpu_custom_call.1} parent=11 // pred_check_branch
          %217 = sbr.rel (%p215) target = $region20
        $region19: #{tpu_custom_call.1} parent=11 // pred_region
          _
        $region20: #{tpu_custom_call.1} parent=11 // pred_fallthru
          _
        // Predicated region
        $region21: #{tpu_custom_call.1} parent=11 // pred_check
          %p218 = pneg %p108
        $region22: #{tpu_custom_call.1} parent=11 // pred_check_branch
          %220 = sbr.rel (%p218) target = $region24
        $region23: #{tpu_custom_call.1} parent=11 // pred_region
          _
        $region24: #{tpu_custom_call.1} parent=11 // pred_fallthru
          _
        // Predicated region
        $region25: #{tpu_custom_call.1} parent=11 // pred_check
          %p221 = pneg %p129
        $region26: #{tpu_custom_call.1} parent=11 // pred_check_branch
          %223 = sbr.rel (%p221) target = $region28
        $region27: #{tpu_custom_call.1} parent=11 // pred_region
          _
        $region28: #{tpu_custom_call.1} parent=11 // pred_fallthru
          _
        // Predicated region
        $region29: #{tpu_custom_call.1} parent=11 // pred_check
          %p224 = pneg %p150
        $region30: #{tpu_custom_call.1} parent=11 // pred_check_branch
          %226 = sbr.rel (%p224) target = $region32
        $region31: #{tpu_custom_call.1} parent=11 // pred_region
          _
        $region32: #{tpu_custom_call.1} parent=11 // pred_fallthru
          _
        // Predicated region
        $region33: #{tpu_custom_call.1} parent=11 // pred_check
          %p227 = pneg %p171
        $region34: #{tpu_custom_call.1} parent=11 // pred_check_branch
          %229 = sbr.rel (%p227) target = $region36
        $region35: #{tpu_custom_call.1} parent=11 // pred_region
          _
        $region36: #{tpu_custom_call.1} parent=11 // pred_fallthru
          _
      $region12: #{tpu_custom_call.1} parent=5 // pred_fallthru
        _
      %p230 = scmp.lt.s32.totalorder %s19, 2
      // Predicated region
      $region37: #{tpu_custom_call.1} parent=5 // pred_check
        %p231 = pneg %p230
      $region38: #{tpu_custom_call.1} parent=5 // pred_check_branch
        %233 = sbr.rel (%p231) target = $region40
      $region39: #{tpu_custom_call.1} parent=5 // pred_region
        // Predicated region
        $region41: #{tpu_custom_call.1} parent=39 // pred_check
          %p234 = pneg %p39
        $region42: #{tpu_custom_call.1} parent=39 // pred_check_branch
          %236 = sbr.rel (%p234) target = $region44
        $region43: #{tpu_custom_call.1} parent=39 // pred_region
          %s237 = sand.u32 %s29, 1
          %s238 = scalar_lea.sflag [#allocation8], %s237
          %s239 = sand.u32 %s29, 1
          %s240 = smul.addr %s239, 4
          %s241 = scalar_lea.vmem [#allocation7], %s240
          %243 = vsyncadd %s238, 0
          %s244 = smul.addr %s19, 4
          %s245 = scalar_lea.hbm %s0, %s244
          %s247 = sshll.u32 %s245, 4
          %s248 = int_to_ptr.hbm [resolvable:$true] %s247
          %s249 = sshll.u32 %s241, 4
          %s250 = int_to_ptr.vmem [resolvable:$true] %s249
          %252 = dma.hbm_to_vmem [thread:$0]  %s248, 64, %s250, %s238
        $region44: #{tpu_custom_call.1} parent=39 // pred_fallthru
          _
      $region40: #{tpu_custom_call.1} parent=5 // pred_fallthru
        _
      %p253 = scmp.le.s32.totalorder 1, %s19
      %p254 = scmp.lt.s32.totalorder %s19, 3
      %p255 = pnand %p253, %p254
      %p256 = pneg %p255
      // Predicated region
      $region45: #{tpu_custom_call.1} parent=5 // pred_check
        _
      $region46: #{tpu_custom_call.1} parent=5 // pred_check_branch
        %258 = sbr.rel (%p255) target = $region48
      $region47: #{tpu_custom_call.1} parent=5 // pred_region
        %s259 = ssub.s32 %s19, 1
        %s260 = sand.u32 %s32, 1
        %s261 = scalar_lea.sflag [#allocation8], %s260
        %s262 = sand.u32 %s32, 1
        %s263 = smul.addr %s262, 4
        %s264 = scalar_lea.vmem [#allocation7], %s263
        // Predicated region
        $region49: #{tpu_custom_call.1} parent=47 // pred_check
          %p265 = pneg %p45
        $region50: #{tpu_custom_call.1} parent=47 // pred_check_branch
          %267 = sbr.rel (%p265) target = $region52
        $region51: #{tpu_custom_call.1} parent=47 // pred_region
          %269 = dma.done %s261, 64
        $region52: #{tpu_custom_call.1} parent=47 // pred_fallthru
          _
        %s270 = sand.u32 %s32, 1
        %s271 = scalar_lea.sflag [#allocation8], %s270
        %s272 = sand.u32 %s32, 1
        %s273 = smul.addr %s272, 4
        %s274 = scalar_lea.vmem [#allocation7], %s273
        %p275 = pneg %p45
        %p276 = pneg %p42
        %p277 = pneg %p66
        %p278 = pneg %p63
        %p279 = pneg %p87
        %p280 = pneg %p84
        %p281 = pneg %p108
        %p282 = pneg %p105
        %p283 = pneg %p129
        %p284 = pneg %p126
        %p285 = pneg %p150
        %p286 = pneg %p147
        %p287 = pneg %p171
        %p288 = pneg %p168
        %p289 = pneg %p197
        %p290 = pneg %p194
        %s291 = sand.u32 %s184, 1
        %s292 = scalar_lea.sflag [#allocation9], %s291
        %s293 = sand.u32 %s184, 1
        %s294 = smul.addr %s293, 8
        %s295 = scalar_lea.vmem [#allocation10], %s294
        %v297 = vld [vmem:[%s264] sm:$0xf]
        %v298 = vunpack.c.l.bf16 %v297
        %v299 = vld [vmem:[%s6] sm:$0xff]
        %v300 = vld [vmem:[%s6 + $0x8] sm:$0x1]
        %v301 = vld [vmem:[%s1] sm:$0xf]
        %v302 = vld [vmem:[%s1 + $0x4] sm:$0xf]
        %v303 = vld [vmem:[%s1 + $0x8] sm:$0xf]
        %v304 = vld [vmem:[%s1 + $0xc] sm:$0xf]
        %v305 = vperm.slane %v299, 0
        %v310 = vunpack.c.l.b16 %v301
        %v311 = vunpack.c.l.b16 %v302
        %v312 = vunpack.c.l.b16 %v303
        %v313 = vunpack.c.l.b16 %v304
        %v314 = vpack.c.b16 %v311, %v310
        %v315 = vpack.c.b16 %v313, %v312
        %vm318 = vcmask 261120
        %v320 = vsel %vm318, %v297, 0
        %322 = vmatpush.bf16.msra.mxu0 0
        %323 = vmatpush.bf16.msra.mxu0 0
        %324 = vmatpush.bf16.msra.mxu0 0
        %325 = vmatpush.bf16.msra.mxu0 0
        %326 = vmatpush.bf16.msra.mxu0 0
        %327 = vmatpush.bf16.msra.mxu0 0
        %328 = vmatpush.bf16.msra.mxu0 %v315
        %329 = vmatpush.bf16.msra.mxu0 %v314
        %330 = vmatmul.bf16.gmra.mxu0 %v320
        %v331 = vpop.f32.mrf.mxu0
        %v332 = vadd.f32 %v305, %v331
        %v333 = vpop.f32.mrf.mxu0
        %334 = vdwg.mxu0
        %v335 = vpack.c.bf16 %v332, %v332
        %vm336 = vcmask 60416
        %337 = vst.msk [vmem:[#allocation2] sm:$0xf] %vm336, %v335
        %339 = vrot.lane.b32.xlu0 %v335, 96
        %v340 = vpop.permute.xlu0 %339
        %342 = vst.msk [vmem:[#allocation3] sm:$0xf] %vm336, %v340
        %343 = vrot.lane.b32.xlu0 %v335, 64
        %v344 = vpop.permute.xlu0 %343
        %346 = vst.msk [vmem:[#allocation4] sm:$0xf] %vm336, %v344
        %347 = vrot.lane.b32.xlu0 %v335, 120
        %v348 = vpop.permute.xlu0 %347
        %s350 = scalar_lea.vmem [#allocation2], 4
        %351 = vst.msk [vmem:[%s350] sm:$0xf] %vm336, %v348
        %352 = vrot.lane.b32.xlu0 %v335, 88
        %v353 = vpop.permute.xlu0 %352
        %s355 = scalar_lea.vmem [#allocation3], 4
        %356 = vst.msk [vmem:[%s355] sm:$0xf] %vm336, %v353
        %357 = vrot.lane.b32.xlu0 %v335, 56
        %v358 = vpop.permute.xlu0 %357
        %s360 = scalar_lea.vmem [#allocation4], 4
        %361 = vst.msk [vmem:[%s360] sm:$0xf] %vm336, %v358
        %362 = vrot.lane.b32.xlu0 %v335, 112
        %v363 = vpop.permute.xlu0 %362
        %s365 = scalar_lea.vmem [#allocation2], 8
        %366 = vst.msk [vmem:[%s365] sm:$0xf] %vm336, %v363
        %367 = vrot.lane.b32.xlu0 %v335, 80
        %v368 = vpop.permute.xlu0 %367
        %s370 = scalar_lea.vmem [#allocation3], 8
        %371 = vst.msk [vmem:[%s370] sm:$0xf] %vm336, %v368
        %372 = vrot.lane.b32.xlu0 %v335, 48
        %v373 = vpop.permute.xlu0 %372
        %s375 = scalar_lea.vmem [#allocation4], 8
        %376 = vst.msk [vmem:[%s375] sm:$0xf] %vm336, %v373
        %377 = vrot.lane.b32.xlu0 %v335, 104
        %v378 = vpop.permute.xlu0 %377
        %s380 = scalar_lea.vmem [#allocation2], 12
        %381 = vst.msk [vmem:[%s380] sm:$0xf] %vm336, %v378
        %382 = vrot.lane.b32.xlu0 %v335, 72
        %v383 = vpop.permute.xlu0 %382
        %s385 = scalar_lea.vmem [#allocation3], 12
        %386 = vst.msk [vmem:[%s385] sm:$0xf] %vm336, %v383
        %387 = vrot.lane.b32.xlu0 %v335, 40
        %v388 = vpop.permute.xlu0 %387
        %s390 = scalar_lea.vmem [#allocation4], 12
        %391 = vst.msk [vmem:[%s390] sm:$0xf] %vm336, %v388
        %v392 = vld [vmem:[#allocation2] sm:$0xf]
        %v393 = vld [vmem:[#allocation2 + $0x4] sm:$0xf]
        %v394 = vld [vmem:[#allocation2 + $0x8] sm:$0xf]
        %v395 = vld [vmem:[#allocation2 + $0xc] sm:$0xf]
        %v396 = vld [vmem:[#allocation3] sm:$0xf]
        %v397 = vld [vmem:[#allocation3 + $0x4] sm:$0xf]
        %v398 = vld [vmem:[#allocation3 + $0x8] sm:$0xf]
        %v399 = vld [vmem:[#allocation3 + $0xc] sm:$0xf]
        %vm400 = vcmask 64512
        %v402 = vsel %vm400, %v392, 0
        %v405 = vsel %vm400, %v396, 0
        %407 = vmatpush.bf16.xpose.msra.mxu0 0
        %408 = vmatpush.bf16.xpose.msra.mxu0 0
        %409 = vmatpush.bf16.xpose.msra.mxu0 0
        %410 = vmatpush.bf16.xpose.msra.mxu0 0
        %411 = vmatpush.bf16.xpose.msra.mxu0 0
        %412 = vmatpush.bf16.xpose.msra.mxu0 0
        %413 = vmatpush.bf16.xpose.msra.mxu0 0
        %414 = vmatpush.bf16.xpose.msra.mxu0 %v405
        %415 = vmatmul.bf16.gmra.mxu0 %v402
        %v416 = vpop.f32.mrf.mxu0
        %v417 = vadd.f32 0.0, %v416
        %v418 = vpop.f32.mrf.mxu0
        %419 = vdwg.mxu0
        %v421 = vsel %vm400, %v393, 0
        %v424 = vsel %vm400, %v397, 0
        %426 = vmatpush.bf16.xpose.msra.mxu0 0
        %427 = vmatpush.bf16.xpose.msra.mxu0 0
        %428 = vmatpush.bf16.xpose.msra.mxu0 0
        %429 = vmatpush.bf16.xpose.msra.mxu0 0
        %430 = vmatpush.bf16.xpose.msra.mxu0 0
        %431 = vmatpush.bf16.xpose.msra.mxu0 0
        %432 = vmatpush.bf16.xpose.msra.mxu0 0
        %433 = vmatpush.bf16.xpose.msra.mxu0 %v424
        %434 = vmatmul.bf16.gmra.mxu0 %v421
        %v435 = vpop.f32.mrf.mxu0
        %v436 = vadd.f32 0.0, %v435
        %v437 = vpop.f32.mrf.mxu0
        %438 = vdwg.mxu0
        %v440 = vsel %vm400, %v394, 0
        %v443 = vsel %vm400, %v398, 0
        %445 = vmatpush.bf16.xpose.msra.mxu0 0
        %446 = vmatpush.bf16.xpose.msra.mxu0 0
        %447 = vmatpush.bf16.xpose.msra.mxu0 0
        %448 = vmatpush.bf16.xpose.msra.mxu0 0
        %449 = vmatpush.bf16.xpose.msra.mxu0 0
        %450 = vmatpush.bf16.xpose.msra.mxu0 0
        %451 = vmatpush.bf16.xpose.msra.mxu0 0
        %452 = vmatpush.bf16.xpose.msra.mxu0 %v443
        %453 = vmatmul.bf16.gmra.mxu0 %v440
        %v454 = vpop.f32.mrf.mxu0
        %v455 = vadd.f32 0.0, %v454
        %v456 = vpop.f32.mrf.mxu0
        %457 = vdwg.mxu0
        %v459 = vsel %vm400, %v395, 0
        %v462 = vsel %vm400, %v399, 0
        %464 = vmatpush.bf16.xpose.msra.mxu0 0
        %465 = vmatpush.bf16.xpose.msra.mxu0 0
        %466 = vmatpush.bf16.xpose.msra.mxu0 0
        %467 = vmatpush.bf16.xpose.msra.mxu0 0
        %468 = vmatpush.bf16.xpose.msra.mxu0 0
        %469 = vmatpush.bf16.xpose.msra.mxu0 0
        %470 = vmatpush.bf16.xpose.msra.mxu0 0
        %471 = vmatpush.bf16.xpose.msra.mxu0 %v462
        %472 = vmatmul.bf16.gmra.mxu0 %v459
        %v473 = vpop.f32.mrf.mxu0
        %v474 = vadd.f32 0.0, %v473
        %v475 = vpop.f32.mrf.mxu0
        %476 = vdwg.mxu0
        %v477 = vsel %vm400, %v417, -inf
        %478 = vmax.xlane.f32.xlu0 %v477
        %v479 = vpop.xlane.xlu0 %478
        %v480 = vsel %vm400, %v436, -inf
        %481 = vmax.xlane.f32.xlu0 %v480
        %v482 = vpop.xlane.xlu0 %481
        %v483 = vsel %vm400, %v455, -inf
        %484 = vmax.xlane.f32.xlu0 %v483
        %v485 = vpop.xlane.xlu0 %484
        %v486 = vsel %vm400, %v474, -inf
        %487 = vmax.xlane.f32.xlu0 %v486
        %v488 = vpop.xlane.xlu0 %487
        %v489 = vsub.f32 %v417, %v479
        %v490 = vsub.f32 %v436, %v482
        %v491 = vsub.f32 %v455, %v485
        %v492 = vsub.f32 %v474, %v488
        %v493 = vmul.f32 %v489, 1.442695
        %v494 = vpow.pop %v493
        %v495 = vmul.f32 %v490, 1.442695
        %v496 = vpow.pop %v495
        %v497 = vmul.f32 %v491, 1.442695
        %v498 = vpow.pop %v497
        %v499 = vmul.f32 %v492, 1.442695
        %v500 = vpow.pop %v499
        %v501 = vsel %vm400, %v494, 0.0
        %502 = vadd.xlane.f32.xlu0 %v501
        %v503 = vpop.xlane.xlu0 %502
        %v504 = vsel %vm400, %v496, 0.0
        %505 = vadd.xlane.f32.xlu0 %v504
        %v506 = vpop.xlane.xlu0 %505
        %v507 = vsel %vm400, %v498, 0.0
        %508 = vadd.xlane.f32.xlu0 %v507
        %v509 = vpop.xlane.xlu0 %508
        %v510 = vsel %vm400, %v500, 0.0
        %511 = vadd.xlane.f32.xlu0 %v510
        %v512 = vpop.xlane.xlu0 %511
        %v513 = vrcp.pop %v503
        %v514 = vrcp.pop %v506
        %v515 = vrcp.pop %v509
        %v516 = vrcp.pop %v512
        %v517 = vmul.f32 %v494, %v513
        %v518 = vmul.f32 %v496, %v514
        %v519 = vmul.f32 %v498, %v515
        %v520 = vmul.f32 %v500, %v516
        %v521 = vpack.c.bf16 %v517, %v517
        %v522 = vpack.c.bf16 %v518, %v518
        %v523 = vpack.c.bf16 %v519, %v519
        %v524 = vpack.c.bf16 %v520, %v520
        %v525 = vld [vmem:[#allocation4] sm:$0xf]
        %v526 = vld [vmem:[#allocation4 + $0x4] sm:$0xf]
        %v527 = vld [vmem:[#allocation4 + $0x8] sm:$0xf]
        %v528 = vld [vmem:[#allocation4 + $0xc] sm:$0xf]
        %v530 = vsel %vm400, %v521, 0
        %vm532 = vcmask 1043456
        %v534 = vsel %vm532, %v525, 0
        %536 = vmatpush.bf16.msra.mxu0 0
        %537 = vmatpush.bf16.msra.mxu0 0
        %538 = vmatpush.bf16.msra.mxu0 0
        %539 = vmatpush.bf16.msra.mxu0 0
        %540 = vmatpush.bf16.msra.mxu0 0
        %541 = vmatpush.bf16.msra.mxu0 0
        %542 = vmatpush.bf16.msra.mxu0 0
        %543 = vmatpush.bf16.msra.mxu0 %v534
        %544 = vmatmul.bf16.gmra.mxu0 %v530
        %v545 = vpop.f32.mrf.mxu0
        %v546 = vadd.f32 0.0, %v545
        %v547 = vpop.f32.mrf.mxu0
        %548 = vdwg.mxu0
        %v550 = vsel %vm400, %v522, 0
        %v553 = vsel %vm532, %v526, 0
        %555 = vmatpush.bf16.msra.mxu0 0
        %556 = vmatpush.bf16.msra.mxu0 0
        %557 = vmatpush.bf16.msra.mxu0 0
        %558 = vmatpush.bf16.msra.mxu0 0
        %559 = vmatpush.bf16.msra.mxu0 0
        %560 = vmatpush.bf16.msra.mxu0 0
        %561 = vmatpush.bf16.msra.mxu0 0
        %562 = vmatpush.bf16.msra.mxu0 %v553
        %563 = vmatmul.bf16.gmra.mxu0 %v550
        %v564 = vpop.f32.mrf.mxu0
        %v565 = vadd.f32 0.0, %v564
        %v566 = vpop.f32.mrf.mxu0
        %567 = vdwg.mxu0
        %v569 = vsel %vm400, %v523, 0
        %v572 = vsel %vm532, %v527, 0
        %574 = vmatpush.bf16.msra.mxu0 0
        %575 = vmatpush.bf16.msra.mxu0 0
        %576 = vmatpush.bf16.msra.mxu0 0
        %577 = vmatpush.bf16.msra.mxu0 0
        %578 = vmatpush.bf16.msra.mxu0 0
        %579 = vmatpush.bf16.msra.mxu0 0
        %580 = vmatpush.bf16.msra.mxu0 0
        %581 = vmatpush.bf16.msra.mxu0 %v572
        %582 = vmatmul.bf16.gmra.mxu0 %v569
        %v583 = vpop.f32.mrf.mxu0
        %v584 = vadd.f32 0.0, %v583
        %v585 = vpop.f32.mrf.mxu0
        %586 = vdwg.mxu0
        %v588 = vsel %vm400, %v524, 0
        %v591 = vsel %vm532, %v528, 0
        %593 = vmatpush.bf16.msra.mxu0 0
        %594 = vmatpush.bf16.msra.mxu0 0
        %595 = vmatpush.bf16.msra.mxu0 0
        %596 = vmatpush.bf16.msra.mxu0 0
        %597 = vmatpush.bf16.msra.mxu0 0
        %598 = vmatpush.bf16.msra.mxu0 0
        %599 = vmatpush.bf16.msra.mxu0 0
        %600 = vmatpush.bf16.msra.mxu0 %v591
        %601 = vmatmul.bf16.gmra.mxu0 %v588
        %v602 = vpop.f32.mrf.mxu0
        %v603 = vadd.f32 0.0, %v602
        %v604 = vpop.f32.mrf.mxu0
        %605 = vdwg.mxu0
        %v606 = vpack.c.bf16 %v546, %v546
        %607 = vst.msk [vmem:[#allocation5] sm:$0xf] %vm336, %v606
        %v608 = vpack.c.bf16 %v565, %v565
        %610 = vrot.lane.b32.xlu0 %v608, 8
        %v611 = vpop.permute.xlu0 %610
        %vm613 = vcmask 126016
        %614 = vst.msk [vmem:[#allocation5] sm:$0xf] %vm613, %v611
        %v615 = vpack.c.bf16 %v584, %v584
        %617 = vrot.lane.b32.xlu0 %v615, 16
        %v618 = vpop.permute.xlu0 %617
        %vm620 = vcmask 191616
        %621 = vst.msk [vmem:[#allocation5] sm:$0xf] %vm620, %v618
        %v622 = vpack.c.bf16 %v603, %v603
        %624 = vrot.lane.b32.xlu0 %v622, 24
        %v625 = vpop.permute.xlu0 %624
        %vm627 = vcmask 257216
        %628 = vst.msk [vmem:[#allocation5] sm:$0xf] %vm627, %v625
        %v629 = vld [vmem:[#allocation5] sm:$0xf]
        %v630 = vld [vmem:[%s2] sm:$0xf]
        %v631 = vld [vmem:[%s2 + $0x4] sm:$0xf]
        %v632 = vld [vmem:[%s2 + $0x8] sm:$0xf]
        %v633 = vld [vmem:[%s2 + $0xc] sm:$0xf]
        %v634 = vperm.slane %v299, 1
        %v639 = vunpack.c.l.b16 %v630
        %v640 = vunpack.c.l.b16 %v631
        %v641 = vunpack.c.l.b16 %v632
        %v642 = vunpack.c.l.b16 %v633
        %v643 = vpack.c.b16 %v640, %v639
        %v644 = vpack.c.b16 %v642, %v641
        %v648 = vsel %vm318, %v629, 0
        %650 = vmatpush.bf16.msra.mxu0 0
        %651 = vmatpush.bf16.msra.mxu0 0
        %652 = vmatpush.bf16.msra.mxu0 0
        %653 = vmatpush.bf16.msra.mxu0 0
        %654 = vmatpush.bf16.msra.mxu0 0
        %655 = vmatpush.bf16.msra.mxu0 0
        %656 = vmatpush.bf16.msra.mxu0 %v644
        %657 = vmatpush.bf16.msra.mxu0 %v643
        %658 = vmatmul.bf16.gmra.mxu0 %v648
        %v659 = vpop.f32.mrf.mxu0
        %v660 = vadd.f32 %v634, %v659
        %v661 = vpop.f32.mrf.mxu0
        %662 = vdwg.mxu0
        %v663 = vadd.f32 %v298, %v660
        %664 = vst.msk [vmem:[#allocation6] sm:$0xff] %vm318, %v663
        %v665 = vld [vmem:[#allocation6] sm:$0xff]
        %v666 = vsel %vm318, %v665, 0.0
        %667 = vadd.xlane.f32.xlu0 %v666
        %v668 = vpop.xlane.xlu0 %667
        %v669 = vrcp.pop 32.0
        %v670 = vmul.f32 32.0, %v669
        %v671 = vsub.f32 1.0, %v670
        %v672 = vmul.f32 %v669, %v671
        %v673 = vadd.f32 %v669, %v672
        %vm674 = vweird.f32 %v669
        %v675 = vsel %vm674, %v669, %v673
        %v676 = vmul.f32 %v668, %v675
        %v677 = vsub.f32 %v665, %v676
        %v678 = vmul.f32 %v677, %v677
        %v679 = vsel %vm318, %v678, 0.0
        %680 = vadd.xlane.f32.xlu0 %v679
        %v681 = vpop.xlane.xlu0 %680
        %v682 = vmul.f32 %v681, %v675
        %v683 = vadd.f32 %v682, 1e-05
        %v684 = vrsqrt.pop %v683
        %v685 = vmul.f32 %v684, %v683
        %v686 = vmul.f32 %v685, %v684
        %v687 = vmul.f32 0.5, %v686
        %v688 = vsub.f32 1.5, %v687
        %v689 = vmul.f32 %v684, %v688
        %vm690 = vweird.f32 %v683
        %vm691 = vweird.f32 %v684
        %vm692 = vmor %vm690, %vm691
        %v693 = vsel %vm692, %v684, %v689
        %v694 = vmul.f32 %v677, %v693
        %v695 = vperm.slane %v299, 2
        %v696 = vmul.f32 %v694, %v695
        %v697 = vperm.slane %v299, 3
        %v698 = vadd.f32 %v696, %v697
        %v699 = vpack.c.bf16 %v698, %v698
        %v700 = vld [vmem:[%s3] sm:$0xf]
        %v701 = vld [vmem:[%s3 + $0x4] sm:$0xf]
        %v702 = vld [vmem:[%s3 + $0x8] sm:$0xf]
        %v703 = vld [vmem:[%s3 + $0xc] sm:$0xf]
        %v704 = vperm.slane %v299, 6
        %v709 = vunpack.c.l.b16 %v700
        %v710 = vunpack.c.l.b16 %v701
        %v711 = vunpack.c.l.b16 %v702
        %v712 = vunpack.c.l.b16 %v703
        %v713 = vpack.c.b16 %v710, %v709
        %v714 = vpack.c.b16 %v712, %v711
        %v718 = vsel %vm318, %v699, 0
        %720 = vmatpush.bf16.msra.mxu0 0
        %721 = vmatpush.bf16.msra.mxu0 0
        %722 = vmatpush.bf16.msra.mxu0 0
        %723 = vmatpush.bf16.msra.mxu0 0
        %724 = vmatpush.bf16.msra.mxu0 0
        %725 = vmatpush.bf16.msra.mxu0 0
        %726 = vmatpush.bf16.msra.mxu0 %v714
        %727 = vmatpush.bf16.msra.mxu0 %v713
        %728 = vmatmul.bf16.gmra.mxu0 %v718
        %v729 = vpop.f32.mrf.mxu0
        %v730 = vadd.f32 %v704, %v729
        %v731 = vpop.f32.mrf.mxu0
        %732 = vdwg.mxu0
        %v733 = vmul.f32 %v730, %v730
        %v734 = vmul.f32 %v730, %v733
        %v735 = vmul.f32 %v734, 0.044715
        %v736 = vadd.f32 %v730, %v735
        %v737 = vmul.f32 %v736, 0.7978846
        %v738 = vtanh.pop %v737
        %v739 = vadd.f32 %v738, 1.0
        %v740 = vmul.f32 %v739, 0.5
        %v741 = vmul.f32 %v730, %v740
        %v742 = vpack.c.bf16 %v741, %v741
        %v743 = vld [vmem:[%s4] sm:$0xf]
        %v744 = vld [vmem:[%s4 + $0x4] sm:$0xf]
        %v745 = vld [vmem:[%s4 + $0x8] sm:$0xf]
        %v746 = vld [vmem:[%s4 + $0xc] sm:$0xf]
        %v747 = vld [vmem:[%s4 + $0x10] sm:$0xf]
        %v748 = vld [vmem:[%s4 + $0x14] sm:$0xf]
        %v749 = vld [vmem:[%s4 + $0x18] sm:$0xf]
        %v750 = vld [vmem:[%s4 + $0x1c] sm:$0xf]
        %v751 = vld [vmem:[%s4 + $0x20] sm:$0xf]
        %v752 = vld [vmem:[%s4 + $0x24] sm:$0xf]
        %v753 = vld [vmem:[%s4 + $0x28] sm:$0xf]
        %v754 = vld [vmem:[%s4 + $0x2c] sm:$0xf]
        %v755 = vld [vmem:[%s4 + $0x30] sm:$0xf]
        %v756 = vld [vmem:[%s4 + $0x34] sm:$0xf]
        %v757 = vld [vmem:[%s4 + $0x38] sm:$0xf]
        %v758 = vld [vmem:[%s4 + $0x3c] sm:$0xf]
        %v759 = vperm.slane %v299, 7
        %v776 = vunpack.c.l.b16 %v743
        %v777 = vunpack.c.l.b16 %v744
        %v778 = vunpack.c.l.b16 %v745
        %v779 = vunpack.c.l.b16 %v746
        %v780 = vunpack.c.l.b16 %v747
        %v781 = vunpack.c.l.b16 %v748
        %v782 = vunpack.c.l.b16 %v749
        %v783 = vunpack.c.l.b16 %v750
        %v784 = vunpack.c.l.b16 %v751
        %v785 = vunpack.c.l.b16 %v752
        %v786 = vunpack.c.l.b16 %v753
        %v787 = vunpack.c.l.b16 %v754
        %v788 = vunpack.c.l.b16 %v755
        %v789 = vunpack.c.l.b16 %v756
        %v790 = vunpack.c.l.b16 %v757
        %v791 = vunpack.c.l.b16 %v758
        %v792 = vpack.c.b16 %v777, %v776
        %v793 = vpack.c.b16 %v779, %v778
        %v794 = vpack.c.b16 %v781, %v780
        %v795 = vpack.c.b16 %v783, %v782
        %v796 = vpack.c.b16 %v785, %v784
        %v797 = vpack.c.b16 %v787, %v786
        %v798 = vpack.c.b16 %v789, %v788
        %v799 = vpack.c.b16 %v791, %v790
        %808 = vmatpush.bf16.msra.mxu0 %v799
        %809 = vmatpush.bf16.msra.mxu0 %v798
        %810 = vmatpush.bf16.msra.mxu0 %v797
        %811 = vmatpush.bf16.msra.mxu0 %v796
        %812 = vmatpush.bf16.msra.mxu0 %v795
        %813 = vmatpush.bf16.msra.mxu0 %v794
        %814 = vmatpush.bf16.msra.mxu0 %v793
        %815 = vmatpush.bf16.msra.mxu0 %v792
        %816 = vmatmul.bf16.gmra.mxu0 %v742
        %v817 = vpop.f32.mrf.mxu0
        %v818 = vadd.f32 %v759, %v817
        %v819 = vpop.f32.mrf.mxu0
        %820 = vdwg.mxu0
        %v821 = vadd.f32 %v698, %v818
        %v822 = vsel %vm318, %v821, 0.0
        %823 = vadd.xlane.f32.xlu0 %v822
        %v824 = vpop.xlane.xlu0 %823
        %v825 = vmul.f32 %v824, %v675
        %v826 = vsub.f32 %v821, %v825
        %v827 = vmul.f32 %v826, %v826
        %v828 = vsel %vm318, %v827, 0.0
        %829 = vadd.xlane.f32.xlu0 %v828
        %v830 = vpop.xlane.xlu0 %829
        %v831 = vmul.f32 %v830, %v675
        %v832 = vadd.f32 %v831, 1e-05
        %v833 = vrsqrt.pop %v832
        %v834 = vmul.f32 %v833, %v832
        %v835 = vmul.f32 %v834, %v833
        %v836 = vmul.f32 0.5, %v835
        %v837 = vsub.f32 1.5, %v836
        %v838 = vmul.f32 %v833, %v837
        %vm839 = vweird.f32 %v832
        %vm840 = vweird.f32 %v833
        %vm841 = vmor %vm839, %vm840
        %v842 = vsel %vm841, %v833, %v838
        %v843 = vmul.f32 %v826, %v842
        %v844 = vperm.slane %v299, 4
        %v845 = vmul.f32 %v843, %v844
        %v846 = vperm.slane %v299, 5
        %v847 = vadd.f32 %v845, %v846
        %v848 = vpack.c.bf16 %v847, %v847
        %v849 = vld [vmem:[%s5] sm:$0xf]
        %v850 = vld [vmem:[%s5 + $0x4] sm:$0xf]
        %v851 = vld [vmem:[%s5 + $0x8] sm:$0xf]
        %v852 = vld [vmem:[%s5 + $0xc] sm:$0xf]
        %v853 = vperm.slane %v300, 0
        %v858 = vunpack.c.l.b16 %v849
        %v859 = vunpack.c.l.b16 %v850
        %v860 = vunpack.c.l.b16 %v851
        %v861 = vunpack.c.l.b16 %v852
        %v862 = vpack.c.b16 %v859, %v858
        %v863 = vpack.c.b16 %v861, %v860
        %v867 = vsel %vm318, %v848, 0
        %869 = vmatpush.bf16.msra.mxu0 0
        %870 = vmatpush.bf16.msra.mxu0 0
        %871 = vmatpush.bf16.msra.mxu0 0
        %872 = vmatpush.bf16.msra.mxu0 0
        %873 = vmatpush.bf16.msra.mxu0 0
        %874 = vmatpush.bf16.msra.mxu0 0
        %875 = vmatpush.bf16.msra.mxu0 %v863
        %876 = vmatpush.bf16.msra.mxu0 %v862
        %877 = vmatmul.bf16.gmra.mxu0 %v867
        %v878 = vpop.f32.mrf.mxu0
        %v879 = vadd.f32 %v853, %v878
        %v880 = vpop.f32.mrf.mxu0
        %881 = vdwg.mxu0
        %882 = vst [vmem:[%s295] sm:$0xff] %v879
        %s883 = sand.u32 %s184, 1
        %s884 = scalar_lea.sflag [#allocation9], %s883
        %s885 = sand.u32 %s184, 1
        %s886 = smul.addr %s885, 8
        %s887 = scalar_lea.vmem [#allocation10], %s886
        // Predicated region
        $region53: #{tpu_custom_call.1} parent=47 // pred_check
          %p888 = pneg %p194
        $region54: #{tpu_custom_call.1} parent=47 // pred_check_branch
          %890 = sbr.rel (%p888) target = $region56
        $region55: #{tpu_custom_call.1} parent=47 // pred_region
          %892 = vsyncadd %s884, 0
          %s893 = smul.addr %s24, 8
          %s894 = scalar_lea.hbm %s7, %s893
          %s896 = sshll.u32 %s887, 4
          %s897 = int_to_ptr.vmem [resolvable:$true] %s896
          %s898 = sshll.u32 %s894, 4
          %s899 = int_to_ptr.hbm [resolvable:$true] %s898
          %901 = dma.vmem_to_hbm [thread:$0]  %s897, 128, %s899, %s884
        $region56: #{tpu_custom_call.1} parent=47 // pred_fallthru
          _
      $region48: #{tpu_custom_call.1} parent=5 // pred_fallthru
        _
      %p902 = scmp.le.s32.totalorder 2, %s19
      // Predicated region
      $region57: #{tpu_custom_call.1} parent=5 // pred_check
        %p903 = pneg %p902
      $region58: #{tpu_custom_call.1} parent=5 // pred_check_branch
        %905 = sbr.rel (%p903) target = $region60
      $region59: #{tpu_custom_call.1} parent=5 // pred_region
        %s906 = ssub.s32 %s19, 2
        // Predicated region
        $region61: #{tpu_custom_call.1} parent=59 // pred_check
          %p907 = pneg %p200
        $region62: #{tpu_custom_call.1} parent=59 // pred_check_branch
          %909 = sbr.rel (%p907) target = $region64
        $region63: #{tpu_custom_call.1} parent=59 // pred_region
          %s910 = sand.u32 %s185, 1
          %s911 = scalar_lea.sflag [#allocation9], %s910
          %s912 = sand.u32 %s185, 1
          %s913 = smul.addr %s912, 8
          %s914 = scalar_lea.vmem [#allocation10], %s913
          %916 = dma.done %s911, 128
        $region64: #{tpu_custom_call.1} parent=59 // pred_fallthru
          _
      $region60: #{tpu_custom_call.1} parent=5 // pred_fallthru
        _
    $region6: #{tpu_custom_call.1} parent=1 // loop_footer
      %s23 = sadd.s32 1, %s19
    $region7: #{tpu_custom_call.1} parent=1 // loop_footer_branch
      %18 = sbr.rel target = $region3
    $region8: #{tpu_custom_call.1} parent=1 // loop_exit
      _
    %917 = vsyncpa [#allocation8], 1
    %s918 = scalar_lea.sflag [#allocation8], 1
    %919 = vsyncpa %s918, 1
    %920 = vsyncpa [#allocation9], 1
    %s921 = scalar_lea.sflag [#allocation9], 1
    %922 = vsyncpa %s921, 1

</llo_original>
